<compile_context>
chip_gen: v7x
topology: tpu7x:2x2x1
jax: 0.10.0
libtpu: 0.0.40
codegen_flags: <defaults>
</compile_context>

<pallas_src>
import functools

import jax
import jax.numpy as jnp
from jax.experimental import pallas as pl
from jax.experimental.pallas import tpu as pltpu

_LANE = 128   # lane width (last dim)


def _round_up(n, m):
    return ((n + m - 1) // m) * m


def _vmem_capacity_bytes():
    """Physical VMEM per TensorCore; conservative 64 MiB if undetectable."""
    try:
        cap = getattr(pltpu.get_tpu_info(), "vmem_capacity_bytes", None)
        if cap:
            return int(cap)
    except Exception:
        pass
    return 64 * 1024 * 1024


def _vmem_estimate_bytes(tm, d_pad, th, n_k, compute_dtype, gate_dtype):
    """Rough resident-VMEM estimate for the chosen tiling."""
    it = jnp.dtype(compute_dtype).itemsize
    gt = jnp.dtype(gate_dtype).itemsize
    wbuf = 1 if n_k == 1 else 2                      # weight-chunk buffering depth
    weights = (2 * d_pad * th + th * d_pad) * it * wbuf
    biases = 2 * th * 4 * wbuf + d_pad * 4
    x_io = 2 * tm * d_pad * it                       # x tile, double buffered
    out_io = 2 * tm * d_pad * it                     # out tile, double buffered
    acc = tm * d_pad * 4                             # f32 accumulator scratch
    inter = tm * th * (2 * 4 + 2 * gt)               # h1/h2 (f32) + gate values
    return weights + biases + x_io + out_io + acc + inter


def _mlp_kernel(x_ref, w12_ref, b12_ref, w3_ref, b3_ref, o_ref, acc_ref, *,
                gate_dtype):
    # Grid: (row tiles [parallel], H chunks [arbitrary / reduction]).
    # x_ref:   (tm, Dp)       compute dtype
    # w12_ref: (2, Dp, th)    stacked [w1_chunk, w2_chunk], compute dtype
    # b12_ref: (2, 1, th)     stacked f32 bias chunks
    # w3_ref:  (th, Dp)       compute dtype
    # b3_ref:  (1, Dp)        f32
    # o_ref:   (tm, Dp)       compute dtype (lane dense)
    # acc_ref: (tm, Dp)       f32 VMEM scratch (persists across H chunks)
    k = pl.program_id(1)

    @pl.when(k == 0)
    def _init():
        acc_ref[...] = jnp.zeros_like(acc_ref)

    x = x_ref[...]
    # Gate matmuls on the MXU, f32 accumulation, f32 bias add.
    h1 = jnp.dot(x, w12_ref[0], preferred_element_type=jnp.float32) + b12_ref[0]
    h2 = jnp.dot(x, w12_ref[1], preferred_element_type=jnp.float32) + b12_ref[1]

    # SiLU gate (bf16 on v6e/v7x halves VPU/EUP work; pass f32 on v5e).
    h1 = h1.astype(gate_dtype)
    h2 = h2.astype(gate_dtype)
    g = h1 * (h2 * jax.nn.sigmoid(h2))

    # Partial L3 product for this H chunk, accumulated in f32.
    acc_ref[...] += jnp.dot(g.astype(w3_ref.dtype), w3_ref[...],
                            preferred_element_type=jnp.float32)

    @pl.when(k == pl.num_programs(1) - 1)
    def _finalize():
        o_ref[...] = (acc_ref[...] + b3_ref[...]).astype(o_ref.dtype)


def prepare_mlp_params(w1, b1, w2, b2, w3, b3, *,
                       compute_dtype=jnp.bfloat16, max_h_chunk=1024):
    """Fuse + zero-pad the weights ONCE (outside the jitted forward).

    Returns (w12, b12, w3p, b3p, h_chunk):
      w12: (2, Dp, Hp)  stacked [w1 | w2], compute dtype
      b12: (2, 1, Hp)   stacked [b1 | b2], f32
      w3p: (Hp, Dp)     compute dtype
      b3p: (1, Dp)      f32
      h_chunk: static H-chunk width (Hp is a multiple of it).
    """
    D, H = w1.shape
    Dp = _round_up(D, _LANE)
    n_k = max(1, -(-H // max_h_chunk))               # ceil-div
    th = _round_up(-(-H // n_k), _LANE)
    Hp = th * n_k

    b1 = jnp.asarray(b1, jnp.float32).reshape(1, -1)
    b2 = jnp.asarray(b2, jnp.float32).reshape(1, -1)
    b3 = jnp.asarray(b3, jnp.float32).reshape(1, -1)

    w12 = jnp.zeros((2, Dp, Hp), compute_dtype)
    w12 = w12.at[0, :D, :H].set(w1.astype(compute_dtype))
    w12 = w12.at[1, :D, :H].set(w2.astype(compute_dtype))
    b12 = jnp.zeros((2, 1, Hp), jnp.float32)
    b12 = b12.at[0, :, :H].set(b1)
    b12 = b12.at[1, :, :H].set(b2)
    w3p = jnp.zeros((Hp, Dp), compute_dtype).at[:H, :D].set(w3.astype(compute_dtype))
    b3p = jnp.zeros((1, Dp), jnp.float32).at[:, :D].set(b3)
    return w12, b12, w3p, b3p, th


@functools.partial(
    jax.jit, static_argnames=("h_chunk", "tm", "compute_dtype", "gate_dtype"))
def mlp_forward(x, w12, b12, w3p, b3p, *, h_chunk, tm=None,
                compute_dtype=jnp.bfloat16, gate_dtype=None):
    """x: (B, S, D); prepared params from prepare_mlp_params."""
    if gate_dtype is None:
        gate_dtype = compute_dtype       # on v5e pass gate_dtype=jnp.float32
    B, S, D = x.shape
    M = B * S
    Hp, Dp = w3p.shape
    th = h_chunk
    n_k = Hp // th

    cap = _vmem_capacity_bytes()
    if tm is None:
        # Larger row tiles where VMEM allows (v5e/v6e: 128 MiB); 256 on v7x.
        tm = 512 if cap >= 100 * 1024 * 1024 else 256

    itemsize = jnp.dtype(compute_dtype).itemsize
    row_align = 8 * max(1, 4 // itemsize)            # 8 (f32) / 16 (bf16) / 32 (i8)
    tm_eff = max(row_align, min(tm, _round_up(M, row_align)))
    tm_eff = _round_up(tm_eff, row_align)
    Mp = _round_up(M, tm_eff)
    # Keep >= 2 "parallel" row steps so both v7x TensorCores get work.
    if Mp // tm_eff < 2 and tm_eff > row_align:
        tm_eff = _round_up(max(row_align, tm_eff // 2), row_align)
        Mp = _round_up(M, tm_eff)

    x2d = jnp.pad(x.reshape(M, D), ((0, Mp - M), (0, Dp - D))).astype(compute_dtype)

    est = _vmem_estimate_bytes(tm_eff, Dp, th, n_k, compute_dtype, gate_dtype)
    # Always set the scoped limit (v5e defaults to 16 MiB) but never exceed
    # 85% of physical VMEM (v7x has only 64 MiB per TensorCore).
    vmem_limit = int(min(max(est * 1.5, 32 * 1024 * 1024), cap * 0.85))

    # Resident (constant-index) weight blocks: single buffer; chunked: double.
    wt_mode = pl.Buffered(1) if n_k == 1 else pl.Buffered(2)
    grid = (Mp // tm_eff, n_k)

    out2d = pl.pallas_call(
        functools.partial(_mlp_kernel, gate_dtype=gate_dtype),
        out_shape=jax.ShapeDtypeStruct((Mp, Dp), compute_dtype),
        grid_spec=pltpu.PrefetchScalarGridSpec(
            num_scalar_prefetch=0,
            grid=grid,
            in_specs=[
                pl.BlockSpec((tm_eff, Dp), lambda i, k: (i, 0)),        # x tile
                pl.BlockSpec((2, Dp, th), lambda i, k: (0, 0, k),
                             pipeline_mode=wt_mode),                    # [w1|w2] chunk
                pl.BlockSpec((2, 1, th), lambda i, k: (0, 0, k),
                             pipeline_mode=wt_mode),                    # [b1|b2] chunk
                pl.BlockSpec((th, Dp), lambda i, k: (k, 0),
                             pipeline_mode=wt_mode),                    # w3 chunk
                pl.BlockSpec((1, Dp), lambda i, k: (0, 0),
                             pipeline_mode=pl.Buffered(1)),             # b3 (resident)
            ],
            out_specs=pl.BlockSpec((tm_eff, Dp), lambda i, k: (i, 0)),
            scratch_shapes=[pltpu.VMEM((tm_eff, Dp), jnp.float32)],
        ),
        compiler_params=pltpu.CompilerParams(
            dimension_semantics=("parallel", "arbitrary"),
            vmem_limit_bytes=vmem_limit,
        ),
    )(x2d, w12, b12, w3p, b3p)

    return out2d[:M, :D].reshape(B, S, D).astype(x.dtype)


def _init_linear(key, in_dim, out_dim):
    """nn.Linear default init (uniform +-1/sqrt(in)); stored (in, out) so x @ W."""
    kw, kb = jax.random.split(key)
    bound = 1.0 / jnp.sqrt(jnp.float32(in_dim))
    w = jax.random.uniform(kw, (in_dim, out_dim), jnp.float32, -bound, bound)
    b = jax.random.uniform(kb, (1, out_dim), jnp.float32, -bound, bound)
    return w, b


def mlp_reference(x, w1, b1, w2, b2, w3, b3):
    hi = jax.lax.Precision.HIGHEST
    h1 = jnp.dot(x, w1, precision=hi) + b1[0]
    h2 = jnp.dot(x, w2, precision=hi) + b2[0]
    g = h1 * (h2 * jax.nn.sigmoid(h2))
    return jnp.dot(g, w3, precision=hi) + b3[0]


if __name__ == "__main__":
    # Small ViT-style shapes.  S=9 makes batch*seq NOT a multiple of the row
    # alignment to exercise remainder padding and the >=2-grid-step split.
    B, S, D, H = 2, 9, 32, 64   # batch, seq, input_dim, hide_dim

    key = jax.random.PRNGKey(0)
    kx, k1, k2, k3 = jax.random.split(key, 4)

    x = jax.random.normal(kx, (B, S, D), jnp.float32)
    w1, b1 = _init_linear(k1, D, H)   # _l1: Linear(input_dim, hide_dim)
    w2, b2 = _init_linear(k2, D, H)   # _l2: Linear(input_dim, hide_dim)
    w3, b3 = _init_linear(k3, H, D)   # _l3: Linear(hide_dim, input_dim)

    ref = mlp_reference(x, w1, b1, w2, b2, w3, b3)

    # f32 compute path: tight agreement with the high-precision reference.
    p32 = prepare_mlp_params(w1, b1, w2, b2, w3, b3, compute_dtype=jnp.float32)
    out_f32 = jax.block_until_ready(
        mlp_forward(x, *p32[:4], h_chunk=p32[4], compute_dtype=jnp.float32))
    assert out_f32.shape == (B, S, D)
    assert jnp.allclose(out_f32, ref, atol=2e-3, rtol=2e-3), "f32 mismatch vs reference"

    # bf16 compute path (optimized default: bf16 matmuls/gate, f32 accumulation).
    pbf = prepare_mlp_params(w1, b1, w2, b2, w3, b3, compute_dtype=jnp.bfloat16)
    out_bf16 = jax.block_until_ready(
        mlp_forward(x, *pbf[:4], h_chunk=pbf[4], compute_dtype=jnp.bfloat16))
    assert out_bf16.shape == (B, S, D)
    assert jnp.allclose(out_bf16, ref, atol=5e-2, rtol=5e-2), "bf16 mismatch vs reference"

    print("KERNEL_OK")
</pallas_src>

<mosaic_0001>
module attributes {stable_mosaic.version = 11 : i64} {
  func.func @_mlp_kernel(%arg0: i32, %arg1: i32, %arg2: memref<16x128xf32, #tpu.memory_space<vmem>>, %arg3: memref<2x128x128xf32, #tpu.memory_space<vmem>>, %arg4: memref<2x1x128xf32, #tpu.memory_space<vmem>>, %arg5: memref<128x128xf32, #tpu.memory_space<vmem>>, %arg6: memref<1x128xf32, #tpu.memory_space<vmem>>, %arg7: memref<16x128xf32, #tpu.memory_space<vmem>>, %arg8: memref<16x128xf32, #tpu.memory_space<vmem>>) attributes {dimension_semantics = [#tpu.dimension_semantics<parallel>, #tpu.dimension_semantics<arbitrary>], iteration_bounds = array<i64: 2, 1>, scalar_prefetch = 0 : i64, scratch_operands = 1 : i64, tpu.core_type = #tpu.core_type<tc>, window_params = [{transform_indices = @transform_0, window_bounds = array<i64: 16, 128>}, {pipeline_mode = #tpu.pipeline_mode<synchronous>, transform_indices = @transform_1, window_bounds = array<i64: 2, 128, 128>}, {pipeline_mode = #tpu.pipeline_mode<synchronous>, transform_indices = @transform_2, window_bounds = array<i64: 2, 1, 128>}, {pipeline_mode = #tpu.pipeline_mode<synchronous>, transform_indices = @transform_3, window_bounds = array<i64: 128, 128>}, {pipeline_mode = #tpu.pipeline_mode<synchronous>, transform_indices = @transform_4, window_bounds = array<i64: 1, 128>}, {transform_indices = @transform_5, window_bounds = array<i64: 16, 128>}]} {
    %c0_i32 = arith.constant 0 : i32
    %0 = arith.cmpi eq, %arg1, %c0_i32 : i32
    %1 = arith.extui %0 : i1 to i32
    %c0_i32_0 = arith.constant 0 : i32
    %2 = arith.cmpi ne, %1, %c0_i32_0 : i32
    scf.if %2 {
      %cst_24 = arith.constant 0.000000e+00 : f32
      %33 = vector.broadcast %cst_24 : f32 to vector<16x128xf32>
      %c0_25 = arith.constant 0 : index
      %c0_26 = arith.constant 0 : index
      %34 = vector.load %arg8[%c0_25, %c0_26] : memref<16x128xf32, #tpu.memory_space<vmem>>, vector<16x128xf32>
      tpu.vector_store %arg8[%c0_25, %c0_26], %33 {strides = array<i32>} : memref<16x128xf32, #tpu.memory_space<vmem>>, vector<16x128xf32>,
    } else {
    }
    %c0 = arith.constant 0 : index
    %c0_1 = arith.constant 0 : index
    %3 = vector.load %arg2[%c0, %c0_1] : memref<16x128xf32, #tpu.memory_space<vmem>>, vector<16x128xf32>
    %c0_2 = arith.constant 0 : index
    %c0_3 = arith.constant 0 : index
    %c0_4 = arith.constant 0 : index
    %4 = vector.load %arg3[%c0_2, %c0_3, %c0_4] : memref<2x128x128xf32, #tpu.memory_space<vmem>>, vector<1x128x128xf32>
    %5 = vector.shape_cast %4 : vector<1x128x128xf32> to vector<128x128xf32>
    %cst = arith.constant dense<0.000000e+00> : vector<16x128xf32>
    %6 = tpu.matmul %3, %5, %cst {dimension_numbers = #tpu.dot_dimension_numbers<[1], [0], [0], [1], [0, 0, 1, 1], [], []>} : vector<16x128xf32>, vector<128x128xf32>, vector<16x128xf32> -> vector<16x128xf32>
    %c0_5 = arith.constant 0 : index
    %c0_6 = arith.constant 0 : index
    %c0_7 = arith.constant 0 : index
    %7 = vector.load %arg4[%c0_5, %c0_6, %c0_7] : memref<2x1x128xf32, #tpu.memory_space<vmem>>, vector<1x1x128xf32>
    %8 = vector.shape_cast %7 : vector<1x1x128xf32> to vector<1x128xf32>
    %9 = vector.broadcast %8 : vector<1x128xf32> to vector<16x128xf32>
    %10 = arith.addf %6, %9 : vector<16x128xf32>
    %c1 = arith.constant 1 : index
    %c0_8 = arith.constant 0 : index
    %c0_9 = arith.constant 0 : index
    %11 = vector.load %arg3[%c1, %c0_8, %c0_9] : memref<2x128x128xf32, #tpu.memory_space<vmem>>, vector<1x128x128xf32>
    %12 = vector.shape_cast %11 : vector<1x128x128xf32> to vector<128x128xf32>
    %cst_10 = arith.constant dense<0.000000e+00> : vector<16x128xf32>
    %13 = tpu.matmul %3, %12, %cst_10 {dimension_numbers = #tpu.dot_dimension_numbers<[1], [0], [0], [1], [0, 0, 1, 1], [], []>} : vector<16x128xf32>, vector<128x128xf32>, vector<16x128xf32> -> vector<16x128xf32>
    %c1_11 = arith.constant 1 : index
    %c0_12 = arith.constant 0 : index
    %c0_13 = arith.constant 0 : index
    %14 = vector.load %arg4[%c1_11, %c0_12, %c0_13] : memref<2x1x128xf32, #tpu.memory_space<vmem>>, vector<1x1x128xf32>
    %15 = vector.shape_cast %14 : vector<1x1x128xf32> to vector<1x128xf32>
    %16 = vector.broadcast %15 : vector<1x128xf32> to vector<16x128xf32>
    %17 = arith.addf %13, %16 : vector<16x128xf32>
    %18 = arith.negf %17 : vector<16x128xf32>
    %19 = math.exp %18 : vector<16x128xf32>
    %cst_14 = arith.constant 1.000000e+00 : f32
    %20 = vector.broadcast %cst_14 : f32 to vector<16x128xf32>
    %21 = arith.addf %20, %19 : vector<16x128xf32>
    %22 = arith.divf %20, %21 : vector<16x128xf32>
    %23 = arith.mulf %17, %22 : vector<16x128xf32>
    %24 = arith.mulf %10, %23 : vector<16x128xf32>
    %c0_15 = arith.constant 0 : index
    %c0_16 = arith.constant 0 : index
    %25 = vector.load %arg8[%c0_15, %c0_16] : memref<16x128xf32, #tpu.memory_space<vmem>>, vector<16x128xf32>
    %c0_17 = arith.constant 0 : index
    %c0_18 = arith.constant 0 : index
    %26 = vector.load %arg5[%c0_17, %c0_18] : memref<128x128xf32, #tpu.memory_space<vmem>>, vector<128x128xf32>
    %cst_19 = arith.constant dense<0.000000e+00> : vector<16x128xf32>
    %27 = tpu.matmul %24, %26, %cst_19 {dimension_numbers = #tpu.dot_dimension_numbers<[1], [0], [0], [1], [0, 0, 1, 1], [], []>} : vector<16x128xf32>, vector<128x128xf32>, vector<16x128xf32> -> vector<16x128xf32>
    %28 = arith.addf %25, %27 : vector<16x128xf32>
    %c0_20 = arith.constant 0 : index
    %c0_21 = arith.constant 0 : index
    %29 = vector.load %arg8[%c0_20, %c0_21] : memref<16x128xf32, #tpu.memory_space<vmem>>, vector<16x128xf32>
    tpu.vector_store %arg8[%c0_20, %c0_21], %28 {strides = array<i32>} : memref<16x128xf32, #tpu.memory_space<vmem>>, vector<16x128xf32>,
    %c0_i32_22 = arith.constant 0 : i32
    %30 = arith.cmpi eq, %arg1, %c0_i32_22 : i32
    %31 = arith.extui %30 : i1 to i32
    %c0_i32_23 = arith.constant 0 : i32
    %32 = arith.cmpi ne, %31, %c0_i32_23 : i32
    scf.if %32 {
      %c0_24 = arith.constant 0 : index
      %c0_25 = arith.constant 0 : index
      %33 = vector.load %arg8[%c0_24, %c0_25] : memref<16x128xf32, #tpu.memory_space<vmem>>, vector<16x128xf32>
      %c0_26 = arith.constant 0 : index
      %c0_27 = arith.constant 0 : index
      %34 = vector.load %arg6[%c0_26, %c0_27] : memref<1x128xf32, #tpu.memory_space<vmem>>, vector<1x128xf32>
      %35 = vector.broadcast %34 : vector<1x128xf32> to vector<16x128xf32>
      %36 = arith.addf %33, %35 : vector<16x128xf32>
      %c0_28 = arith.constant 0 : index
      %c0_29 = arith.constant 0 : index
      %37 = vector.load %arg7[%c0_28, %c0_29] : memref<16x128xf32, #tpu.memory_space<vmem>>, vector<16x128xf32>
      tpu.vector_store %arg7[%c0_28, %c0_29], %36 {strides = array<i32>} : memref<16x128xf32, #tpu.memory_space<vmem>>, vector<16x128xf32>,
    } else {
    }
    return
  }
  func.func @transform_0(%arg0: i32, %arg1: i32) -> (i32, i32) {
    %c0_i32 = arith.constant 0 : i32
    %c0_i32_0 = arith.constant 0 : i32
    return %arg0, %c0_i32 : i32, i32
  }
  func.func @transform_1(%arg0: i32, %arg1: i32) -> (i32, i32, i32) {
    %c0_i32 = arith.constant 0 : i32
    %c0_i32_0 = arith.constant 0 : i32
    %c0_i32_1 = arith.constant 0 : i32
    return %c0_i32, %c0_i32_0, %arg1 : i32, i32, i32
  }
  func.func @transform_2(%arg0: i32, %arg1: i32) -> (i32, i32, i32) {
    %c0_i32 = arith.constant 0 : i32
    %c0_i32_0 = arith.constant 0 : i32
    %c0_i32_1 = arith.constant 0 : i32
    return %c0_i32, %c0_i32_0, %arg1 : i32, i32, i32
  }
  func.func @transform_3(%arg0: i32, %arg1: i32) -> (i32, i32) {
    %c0_i32 = arith.constant 0 : i32
    %c0_i32_0 = arith.constant 0 : i32
    return %arg1, %c0_i32 : i32, i32
  }
  func.func @transform_4(%arg0: i32, %arg1: i32) -> (i32, i32) {
    %c0_i32 = arith.constant 0 : i32
    %c0_i32_0 = arith.constant 0 : i32
    %c0_i32_1 = arith.constant 0 : i32
    return %c0_i32, %c0_i32_0 : i32, i32
  }
  func.func @transform_5(%arg0: i32, %arg1: i32) -> (i32, i32) {
    %c0_i32 = arith.constant 0 : i32
    %c0_i32_0 = arith.constant 0 : i32
    return %arg0, %c0_i32 : i32, i32
  }
}

</mosaic_0001>

<llo_original>
// kernel: mlp_forward.1
$region0: #{mlp_forward.1}
  #allocation0 [shape = 'u32[]', space=smem, size = 0x4, offset = 0x4, fixed_abs, tag = 'smem constant byte address 0x4 - core index']
  #allocation1 [shape = 'u32[144,128]{1,0:T(1,128)}', space=vmem, size = 0x12000, scoped, tag = 'internal scratch']
  #allocation2 [shape = 'f32[16,128]{1,0:T(8,128)}', space=vmem, size = 0x2000, scoped, tag = 'scratch operand']
  %s0 = inlined_call_operand.vmem [shape: f32[32,128], index: 0, kind: input, shape index: {}]
  %s1 = inlined_call_operand.hbm [shape: f32[2,128,128], index: 1, kind: input, shape index: {}]
  %s2 = inlined_call_operand.vmem [shape: f32[2,1,128], index: 2, kind: input, shape index: {}]
  %s3 = inlined_call_operand.vmem [shape: f32[128,128], index: 3, kind: input, shape index: {}]
  %s4 = inlined_call_operand.vmem [shape: f32[1,128], index: 4, kind: input, shape index: {}]
  %s5 = inlined_call_operand.vmem [shape: f32[32,128], index: 5, kind: output, shape index: {}]
  %s6 = sld [smem:[#allocation0]]
  $region65: #{mlp_forward.1} parent=0
    _
  %s8 = ssub.s32 1, %s6
  %s9 = scalar_select 0, %s8, %s6
  $region1: #{mlp_forward.1} parent=0
    #allocation3 [shape = 'u8[131072]{0}', space=vmem, size = 0x20000, scoped, tag = 'input window, operand 1, single buffered']
    #allocation4 [shape = 's32[2]{0}', space=sflag, size = 0x8, scoped, tag = 'scoped memory for mlp_forward.1']
    %10 = vsyncpa [#allocation4], 0
    loop: start=0, step=1, limit=4
    $region2: #{mlp_forward.1} parent=1 // loop_pre_header
      _
    $region3: #{mlp_forward.1} parent=1 // loop_header
      %s12 = sphi 0, %s16
      %p13 = scmp.ge.s32.totalorder %s12, 4
      %s19 = sphi 0, %s31
      %s20 = sphi 0, %s27
      %s21 = sphi 0, %s19
      %s22 = sphi 0, %s20
      %s23 = sphi 0, %s21
      %s24 = sphi 0, %s22
      %s34 = sphi 0, %s36
      %s37 = sphi 0, %s34
      %s38 = sphi 0, %s37
      %s54 = sphi 0, %s38
      %s60 = sphi 0, %s62
      %s63 = sphi 0, %s60
      %s64 = sphi 0, %s63
      %s80 = sphi 0, %s64
      %s86 = sphi 0, %s88
      %s89 = sphi 0, %s86
      %s90 = sphi 0, %s89
      %s106 = sphi 0, %s90
      %s112 = sphi 0, %s114
      %s115 = sphi 0, %s112
      %s116 = sphi 0, %s115
      %s132 = sphi 0, %s116
      %s136 = sphi 0, %s136
      %s138 = sphi 0, %s136
      %s139 = sphi 0, %s138
      %s153 = sphi 0, %s139
      %s159 = sphi 0, %s161
      %s162 = sphi 0, %s159
      %s163 = sphi 0, %s162
      %s179 = sphi 0, %s163
    $region4: #{mlp_forward.1} parent=1 // loop_header_branch
      %15 = sbr.rel (%p13) target = $region8
    $region5: #{mlp_forward.1} parent=1 // loop_body
      %s17 = ssub.s32 %s12, 1
      %s18 = ssub.s32 %s12, 2
      %s25 = sadd.s32 1, %s20
      %p26 = scmp.ge.s32.totalorder %s25, 1
      %s27 = scalar_select %p26, 0, %s25
      %s28 = sadd.s32 1, %s19
      %s29 = scalar_select %p26, %s28, %s19
      %p30 = scmp.ge.s32.totalorder %s29, 2
      %s31 = scalar_select %p30, 0, %s29
      %s32 = ssub.s32 %s19, %s31
      %p33 = scmp.eq.s32.totalorder %s32, 0
      %s35 = sadd.s32 %s34, 1
      %s36 = scalar_select %p33, %s34, %s35
      %p39 = pneg %p33
      %p40 = scmp.eq.s32.totalorder %s12, 1
      %p41 = por %p39, %p40
      %p42 = scmp.ne.s32.totalorder %s34, %s37
      %p43 = scmp.eq.s32.totalorder %s12, 0
      %p44 = por %p42, %p43
      %p45 = scmp.ne.s32.totalorder %s34, %s37
      %p46 = scmp.eq.s32.totalorder %s17, 1
      %p47 = por %p45, %p46
      %p48 = scmp.ne.s32.totalorder %s37, %s38
      %p49 = scmp.eq.s32.totalorder %s17, 0
      %p50 = por %p48, %p49
      %p51 = scmp.ne.s32.totalorder %s37, %s38
      %p52 = scmp.eq.s32.totalorder %s18, 1
      %p53 = por %p51, %p52
      %p55 = scmp.ne.s32.totalorder %s38, %s54
      %p56 = scmp.eq.s32.totalorder %s18, 0
      %p57 = por %p55, %p56
      %s58 = ssub.s32 %s20, %s27
      %p59 = scmp.eq.s32.totalorder %s58, 0
      %s61 = sadd.s32 %s60, 1
      %s62 = scalar_select %p59, %s60, %s61
      %p65 = pneg %p59
      %p66 = scmp.eq.s32.totalorder %s12, 1
      %p67 = por %p65, %p66
      %p68 = scmp.ne.s32.totalorder %s60, %s63
      %p69 = scmp.eq.s32.totalorder %s12, 0
      %p70 = por %p68, %p69
      %p71 = scmp.ne.s32.totalorder %s60, %s63
      %p72 = scmp.eq.s32.totalorder %s17, 1
      %p73 = por %p71, %p72
      %p74 = scmp.ne.s32.totalorder %s63, %s64
      %p75 = scmp.eq.s32.totalorder %s17, 0
      %p76 = por %p74, %p75
      %p77 = scmp.ne.s32.totalorder %s63, %s64
      %p78 = scmp.eq.s32.totalorder %s18, 1
      %p79 = por %p77, %p78
      %p81 = scmp.ne.s32.totalorder %s64, %s80
      %p82 = scmp.eq.s32.totalorder %s18, 0
      %p83 = por %p81, %p82
      %s84 = ssub.s32 %s20, %s27
      %p85 = scmp.eq.s32.totalorder %s84, 0
      %s87 = sadd.s32 %s86, 1
      %s88 = scalar_select %p85, %s86, %s87
      %p91 = pneg %p85
      %p92 = scmp.eq.s32.totalorder %s12, 1
      %p93 = por %p91, %p92
      %p94 = scmp.ne.s32.totalorder %s86, %s89
      %p95 = scmp.eq.s32.totalorder %s12, 0
      %p96 = por %p94, %p95
      %p97 = scmp.ne.s32.totalorder %s86, %s89
      %p98 = scmp.eq.s32.totalorder %s17, 1
      %p99 = por %p97, %p98
      %p100 = scmp.ne.s32.totalorder %s89, %s90
      %p101 = scmp.eq.s32.totalorder %s17, 0
      %p102 = por %p100, %p101
      %p103 = scmp.ne.s32.totalorder %s89, %s90
      %p104 = scmp.eq.s32.totalorder %s18, 1
      %p105 = por %p103, %p104
      %p107 = scmp.ne.s32.totalorder %s90, %s106
      %p108 = scmp.eq.s32.totalorder %s18, 0
      %p109 = por %p107, %p108
      %s110 = ssub.s32 %s20, %s27
      %p111 = scmp.eq.s32.totalorder %s110, 0
      %s113 = sadd.s32 %s112, 1
      %s114 = scalar_select %p111, %s112, %s113
      %p117 = pneg %p111
      %p118 = scmp.eq.s32.totalorder %s12, 1
      %p119 = por %p117, %p118
      %p120 = scmp.ne.s32.totalorder %s112, %s115
      %p121 = scmp.eq.s32.totalorder %s12, 0
      %p122 = por %p120, %p121
      %p123 = scmp.ne.s32.totalorder %s112, %s115
      %p124 = scmp.eq.s32.totalorder %s17, 1
      %p125 = por %p123, %p124
      %p126 = scmp.ne.s32.totalorder %s115, %s116
      %p127 = scmp.eq.s32.totalorder %s17, 0
      %p128 = por %p126, %p127
      %p129 = scmp.ne.s32.totalorder %s115, %s116
      %p130 = scmp.eq.s32.totalorder %s18, 1
      %p131 = por %p129, %p130
      %p133 = scmp.ne.s32.totalorder %s116, %s132
      %p134 = scmp.eq.s32.totalorder %s18, 0
      %p135 = por %p133, %p134
      %s137 = sadd.s32 %s136, 1
      %p140 = scmp.eq.s32.totalorder %s12, 1
      %p141 = scmp.ne.s32.totalorder %s136, %s138
      %p142 = scmp.eq.s32.totalorder %s12, 0
      %p143 = por %p141, %p142
      %p144 = scmp.ne.s32.totalorder %s136, %s138
      %p145 = scmp.eq.s32.totalorder %s17, 1
      %p146 = por %p144, %p145
      %p147 = scmp.ne.s32.totalorder %s138, %s139
      %p148 = scmp.eq.s32.totalorder %s17, 0
      %p149 = por %p147, %p148
      %p150 = scmp.ne.s32.totalorder %s138, %s139
      %p151 = scmp.eq.s32.totalorder %s18, 1
      %p152 = por %p150, %p151
      %p154 = scmp.ne.s32.totalorder %s139, %s153
      %p155 = scmp.eq.s32.totalorder %s18, 0
      %p156 = por %p154, %p155
      %s157 = ssub.s32 %s19, %s31
      %p158 = scmp.eq.s32.totalorder %s157, 0
      %s160 = sadd.s32 %s159, 1
      %s161 = scalar_select %p158, %s159, %s160
      %p164 = pneg %p158
      %p165 = scmp.eq.s32.totalorder %s12, 1
      %p166 = por %p164, %p165
      %p167 = scmp.ne.s32.totalorder %s159, %s162
      %p168 = scmp.eq.s32.totalorder %s12, 0
      %p169 = por %p167, %p168
      %p170 = scmp.ne.s32.totalorder %s159, %s162
      %p171 = scmp.eq.s32.totalorder %s17, 1
      %p172 = por %p170, %p171
      %p173 = scmp.ne.s32.totalorder %s162, %s163
      %p174 = scmp.eq.s32.totalorder %s17, 0
      %p175 = por %p173, %p174
      %p176 = scmp.ne.s32.totalorder %s162, %s163
      %p177 = scmp.eq.s32.totalorder %s18, 1
      %p178 = por %p176, %p177
      %p180 = scmp.ne.s32.totalorder %s163, %s179
      %p181 = scmp.eq.s32.totalorder %s18, 0
      %p182 = por %p180, %p181
      %p183 = scmp.le.s32.totalorder 1, %s12
      %p184 = scmp.lt.s32.totalorder %s12, 3
      %p185 = pnand %p183, %p184
      %p186 = pneg %p185
      // Predicated region
      $region9: #{mlp_forward.1} parent=5 // pred_check
        _
      $region10: #{mlp_forward.1} parent=5 // pred_check_branch
        %188 = sbr.rel (%p185) target = $region12
      $region11: #{mlp_forward.1} parent=5 // pred_region
        %s189 = ssub.s32 %s12, 1
        // Predicated region
        $region13: #{mlp_forward.1} parent=11 // pred_check
          %p190 = pneg %p76
        $region14: #{mlp_forward.1} parent=11 // pred_check_branch
          %192 = sbr.rel (%p190) target = $region16
        $region15: #{mlp_forward.1} parent=11 // pred_region
          %s194 = ssub.s32 4096, 4096
          %195 = vsyncadd [#allocation4], %s194
          %s196 = smul.addr %s22, 128
          %s197 = scalar_lea.hbm %s1, %s196
          %s198 = sshll.u32 [#allocation3], 4
          %s199 = int_to_ptr.vmem [resolvable:$true] %s198
          %204 = dma.hbm_to_vmem [thread:$0]  %s197, 4096, %s199, [#allocation4], 128, 128, 8
        $region16: #{mlp_forward.1} parent=11 // pred_fallthru
          _
        // Predicated region
        $region17: #{mlp_forward.1} parent=11 // pred_check
          %p205 = pneg %p102
        $region18: #{mlp_forward.1} parent=11 // pred_check_branch
          %207 = sbr.rel (%p205) target = $region20
        $region19: #{mlp_forward.1} parent=11 // pred_region
          %p208 = scmp.lt.s32.totalorder %s22, 0
          %s209 = scalar_select %p208, %s22, 0
          %s210 = scalar_lea.vmem %s2, %s209
        $region20: #{mlp_forward.1} parent=11 // pred_fallthru
          _
        // Predicated region
        $region21: #{mlp_forward.1} parent=11 // pred_check
          %p211 = pneg %p128
        $region22: #{mlp_forward.1} parent=11 // pred_check_branch
          %213 = sbr.rel (%p211) target = $region24
        $region23: #{mlp_forward.1} parent=11 // pred_region
          %s214 = smul.u32 16, %s22
          %p215 = scmp.lt.s32.totalorder %s214, 15
          %s216 = scalar_select %p215, %s214, 15
          %s217 = smul.addr %s216, 8
          %s218 = scalar_lea.vmem %s3, %s217
          %s219 = smul.u32 16, %s22
        $region24: #{mlp_forward.1} parent=11 // pred_fallthru
          _
        // Predicated region
        $region25: #{mlp_forward.1} parent=11 // pred_check
          %p220 = pneg %p149
        $region26: #{mlp_forward.1} parent=11 // pred_check_branch
          %222 = sbr.rel (%p220) target = $region28
        $region27: #{mlp_forward.1} parent=11 // pred_region
          _
        $region28: #{mlp_forward.1} parent=11 // pred_fallthru
          _
      $region12: #{mlp_forward.1} parent=5 // pred_fallthru
        _
      %p223 = scmp.lt.s32.totalorder %s12, 2
      // Predicated region
      $region29: #{mlp_forward.1} parent=5 // pred_check
        %p224 = pneg %p223
      $region30: #{mlp_forward.1} parent=5 // pred_check_branch
        %226 = sbr.rel (%p224) target = $region32
      $region31: #{mlp_forward.1} parent=5 // pred_region
        // Predicated region
        $region33: #{mlp_forward.1} parent=31 // pred_check
          %p227 = pneg %p44
        $region34: #{mlp_forward.1} parent=31 // pred_check_branch
          %229 = sbr.rel (%p227) target = $region36
        $region35: #{mlp_forward.1} parent=31 // pred_region
          %s230 = smul.u32 2, %s19
          %p231 = scmp.lt.s32.totalorder %s230, 3
          %s232 = scalar_select %p231, %s230, 3
          %s233 = smul.addr %s232, 8
          %s234 = scalar_lea.vmem %s0, %s233
          %s235 = smul.u32 2, %s19
        $region36: #{mlp_forward.1} parent=31 // pred_fallthru
          _
      $region32: #{mlp_forward.1} parent=5 // pred_fallthru
        _
      %p236 = scmp.le.s32.totalorder 1, %s12
      %p237 = scmp.lt.s32.totalorder %s12, 3
      %p238 = pnand %p236, %p237
      %p239 = pneg %p238
      // Predicated region
      $region37: #{mlp_forward.1} parent=5 // pred_check
        _
      $region38: #{mlp_forward.1} parent=5 // pred_check_branch
        %241 = sbr.rel (%p238) target = $region40
      $region39: #{mlp_forward.1} parent=5 // pred_region
        %s242 = ssub.s32 %s12, 1
        // Predicated region
        $region41: #{mlp_forward.1} parent=39 // pred_check
          %p243 = pneg %p76
        $region42: #{mlp_forward.1} parent=39 // pred_check_branch
          %245 = sbr.rel (%p243) target = $region44
        $region43: #{mlp_forward.1} parent=39 // pred_region
          %246 = dma.done [#allocation4], 4096
        $region44: #{mlp_forward.1} parent=39 // pred_fallthru
          _
        %s247 = smul.u32 2, %s21
        %p248 = scmp.lt.s32.totalorder %s247, 3
        %s249 = scalar_select %p248, %s247, 3
        %s250 = smul.addr %s249, 8
        %s251 = scalar_lea.vmem %s0, %s250
        %p252 = pneg %p50
        %p253 = pneg %p47
        %p254 = pneg %p76
        %p255 = pneg %p73
        %p256 = scmp.lt.s32.totalorder %s22, 0
        %s257 = scalar_select %p256, %s22, 0
        %s258 = scalar_lea.vmem %s2, %s257
        %p259 = pneg %p102
        %p260 = pneg %p99
        %s261 = smul.u32 16, %s22
        %p262 = scmp.lt.s32.totalorder %s261, 15
        %s263 = scalar_select %p262, %s261, 15
        %s264 = smul.addr %s263, 8
        %s265 = scalar_lea.vmem %s3, %s264
        %p266 = pneg %p128
        %p267 = pneg %p125
        %p268 = pneg %p149
        %p269 = pneg %p146
        %p270 = pneg %p175
        %p271 = pneg %p172
        %s272 = smul.u32 2, %s21
        %p273 = scmp.lt.s32.totalorder %s272, 3
        %s274 = scalar_select %p273, %s272, 3
        %s275 = smul.addr %s274, 8
        %s276 = scalar_lea.vmem %s5, %s275
        %s277 = smul.u32 2, %s21
        %p278 = scmp.lt.s32.totalorder %s277, 3
        %s279 = scalar_select %p278, %s277, 3
        %s280 = smul.addr %s279, 8
        %s281 = scalar_lea.vmem %s0, %s280
        %s282 = smul.u32 2, %s21
        %p283 = scmp.lt.s32.totalorder %s22, 0
        %s284 = scalar_select %p283, %s22, 0
        %s285 = scalar_lea.vmem %s2, %s284
        %s286 = smul.u32 16, %s22
        %p287 = scmp.lt.s32.totalorder %s286, 15
        %s288 = scalar_select %p287, %s286, 15
        %s289 = smul.addr %s288, 8
        %s290 = scalar_lea.vmem %s3, %s289
        %s291 = smul.u32 16, %s22
        %s292 = smul.u32 2, %s21
        %p293 = scmp.lt.s32.totalorder %s292, 3
        %s294 = scalar_select %p293, %s292, 3
        %s295 = smul.addr %s294, 8
        %s296 = scalar_lea.vmem %s5, %s295
        %s297 = smul.u32 2, %s21
        %p298 = scmp.eq.s32.totalorder %s22, 0
        // Predicated region
        $region45: #{mlp_forward.1} parent=39 // pred_check
          %p299 = pneg %p298
        $region46: #{mlp_forward.1} parent=39 // pred_check_branch
          %301 = sbr.rel (%p299) target = $region48
        $region47: #{mlp_forward.1} parent=39 // pred_region
          %302 = vst [vmem:[#allocation2] sm:$0xff] 0.0
          %303 = vst [vmem:[#allocation2 + $0x8] sm:$0xff] 0.0
        $region48: #{mlp_forward.1} parent=39 // pred_fallthru
          _
        %v304 = vld [vmem:[%s281] sm:$0xff]
        %v305 = vld [vmem:[%s281 + $0x8] sm:$0xff]
        %v306 = vld [vmem:[#allocation3] sm:$0xff]
        %v307 = vld [vmem:[#allocation3 + $0x8] sm:$0xff]
        %v308 = vld [vmem:[#allocation3 + $0x10] sm:$0xff]
        %v309 = vld [vmem:[#allocation3 + $0x18] sm:$0xff]
        %v310 = vld [vmem:[#allocation3 + $0x20] sm:$0xff]
        %v311 = vld [vmem:[#allocation3 + $0x28] sm:$0xff]
        %v312 = vld [vmem:[#allocation3 + $0x30] sm:$0xff]
        %v313 = vld [vmem:[#allocation3 + $0x38] sm:$0xff]
        %v314 = vld [vmem:[#allocation3 + $0x40] sm:$0xff]
        %v315 = vld [vmem:[#allocation3 + $0x48] sm:$0xff]
        %v316 = vld [vmem:[#allocation3 + $0x50] sm:$0xff]
        %v317 = vld [vmem:[#allocation3 + $0x58] sm:$0xff]
        %v318 = vld [vmem:[#allocation3 + $0x60] sm:$0xff]
        %v319 = vld [vmem:[#allocation3 + $0x68] sm:$0xff]
        %v320 = vld [vmem:[#allocation3 + $0x70] sm:$0xff]
        %v321 = vld [vmem:[#allocation3 + $0x78] sm:$0xff]
        %v322 = vld [vmem:[%s285] sm:$0x1]
        %v324 = vlaneseq
        %v325 = vshrl.u32 %v324, 7
        %v326 = vsub.s32 0, %v325
        %v327 = vrot.slane %v322, %v326
        %329 = vmatprep.subr.mxu0 0.0
        %330 = vmatpush1.msra.mxu0 %v306
        %331 = vmatprep.subr.mxu0 0.0
        %332 = vmatpush1.msra.mxu0 %v307
        %333 = vmatprep.subr.mxu0 0.0
        %334 = vmatpush1.msra.mxu0 %v308
        %335 = vmatprep.subr.mxu0 0.0
        %336 = vmatpush1.msra.mxu0 %v309
        %337 = vmatprep.subr.mxu0 0.0
        %338 = vmatpush1.msra.mxu0 %v310
        %339 = vmatprep.subr.mxu0 0.0
        %340 = vmatpush1.msra.mxu0 %v311
        %341 = vmatprep.subr.mxu0 0.0
        %342 = vmatpush1.msra.mxu0 %v312
        %343 = vmatprep.subr.mxu0 0.0
        %344 = vmatpush1.msra.mxu0 %v313
        %345 = vmatprep.subr.mxu0 0.0
        %346 = vmatpush1.msra.mxu0 %v314
        %347 = vmatprep.subr.mxu0 0.0
        %348 = vmatpush1.msra.mxu0 %v315
        %349 = vmatprep.subr.mxu0 0.0
        %350 = vmatpush1.msra.mxu0 %v316
        %351 = vmatprep.subr.mxu0 0.0
        %352 = vmatpush1.msra.mxu0 %v317
        %353 = vmatprep.subr.mxu0 0.0
        %354 = vmatpush1.msra.mxu0 %v318
        %355 = vmatprep.subr.mxu0 0.0
        %356 = vmatpush1.msra.mxu0 %v319
        %357 = vmatprep.subr.mxu0 0.0
        %358 = vmatpush1.msra.mxu0 %v320
        %359 = vmatprep.subr.mxu0 0.0
        %360 = vmatpush1.msra.mxu0 %v321
        %361 = vmatprep.subr.mxu0 0.0
        %362 = vmatpush1.msra.mxu0 0.0
        %363 = vmatprep.subr.mxu0 0.0
        %364 = vmatpush1.msra.mxu0 0.0
        %365 = vmatprep.subr.mxu0 0.0
        %366 = vmatpush1.msra.mxu0 0.0
        %367 = vmatprep.subr.mxu0 0.0
        %368 = vmatpush1.msra.mxu0 0.0
        %369 = vmatprep.subr.mxu0 0.0
        %370 = vmatpush1.msra.mxu0 0.0
        %371 = vmatprep.subr.mxu0 0.0
        %372 = vmatpush1.msra.mxu0 0.0
        %373 = vmatprep.subr.mxu0 0.0
        %374 = vmatpush1.msra.mxu0 0.0
        %375 = vmatprep.subr.mxu0 0.0
        %376 = vmatpush1.msra.mxu0 0.0
        %377 = vmatprep.subr.mxu0 0.0
        %378 = vmatpush1.msra.mxu0 0.0
        %379 = vmatprep.subr.mxu0 0.0
        %380 = vmatpush1.msra.mxu0 0.0
        %381 = vmatprep.subr.mxu0 0.0
        %382 = vmatpush1.msra.mxu0 0.0
        %383 = vmatprep.subr.mxu0 0.0
        %384 = vmatpush1.msra.mxu0 0.0
        %385 = vmatprep.subr.mxu0 0.0
        %386 = vmatpush1.msra.mxu0 0.0
        %387 = vmatprep.subr.mxu0 0.0
        %388 = vmatpush1.msra.mxu0 0.0
        %389 = vmatprep.subr.mxu0 0.0
        %390 = vmatpush1.msra.mxu0 0.0
        %391 = vmatprep.subr.mxu0 0.0
        %392 = vmatpush1.msra.mxu0 0.0
        %393 = vmatprep.mubr.f32.mxu0 0.0
        %394 = vmatmul.mubr.f32.gmra.mrb[0].mxu0 %v304
        %v395 = vpop.f32.mrb[0].mxu0
        %v396 = vadd.f32 %v327, %v395
        %v397 = vpop.f32.mrb[0].mxu0
        %398 = vmatprep.mubr.f32.mxu0 0.0
        %399 = vmatmul.mubr.f32.gmra.mrb[0].mxu0 %v305
        %v400 = vpop.f32.mrb[0].mxu0
        %v401 = vadd.f32 %v327, %v400
        %v402 = vpop.f32.mrb[0].mxu0
        %403 = vdwg.mxu0
        %s404 = scalar_lea.vmem [#allocation3], 128
        %v405 = vld [vmem:[%s404] sm:$0xff]
        %v406 = vld [vmem:[%s404 + $0x8] sm:$0xff]
        %v407 = vld [vmem:[%s404 + $0x10] sm:$0xff]
        %v408 = vld [vmem:[%s404 + $0x18] sm:$0xff]
        %v409 = vld [vmem:[%s404 + $0x20] sm:$0xff]
        %v410 = vld [vmem:[%s404 + $0x28] sm:$0xff]
        %v411 = vld [vmem:[%s404 + $0x30] sm:$0xff]
        %v412 = vld [vmem:[%s404 + $0x38] sm:$0xff]
        %v413 = vld [vmem:[%s404 + $0x40] sm:$0xff]
        %v414 = vld [vmem:[%s404 + $0x48] sm:$0xff]
        %v415 = vld [vmem:[%s404 + $0x50] sm:$0xff]
        %v416 = vld [vmem:[%s404 + $0x58] sm:$0xff]
        %v417 = vld [vmem:[%s404 + $0x60] sm:$0xff]
        %v418 = vld [vmem:[%s404 + $0x68] sm:$0xff]
        %v419 = vld [vmem:[%s404 + $0x70] sm:$0xff]
        %v420 = vld [vmem:[%s404 + $0x78] sm:$0xff]
        %s421 = scalar_lea.vmem %s285, 1
        %v422 = vld [vmem:[%s421] sm:$0x1]
        %v424 = vlaneseq
        %v425 = vshrl.u32 %v424, 7
        %v426 = vsub.s32 0, %v425
        %v427 = vrot.slane %v422, %v426
        %429 = vmatprep.subr.mxu0 0.0
        %430 = vmatpush1.msra.mxu0 %v405
        %431 = vmatprep.subr.mxu0 0.0
        %432 = vmatpush1.msra.mxu0 %v406
        %433 = vmatprep.subr.mxu0 0.0
        %434 = vmatpush1.msra.mxu0 %v407
        %435 = vmatprep.subr.mxu0 0.0
        %436 = vmatpush1.msra.mxu0 %v408
        %437 = vmatprep.subr.mxu0 0.0
        %438 = vmatpush1.msra.mxu0 %v409
        %439 = vmatprep.subr.mxu0 0.0
        %440 = vmatpush1.msra.mxu0 %v410
        %441 = vmatprep.subr.mxu0 0.0
        %442 = vmatpush1.msra.mxu0 %v411
        %443 = vmatprep.subr.mxu0 0.0
        %444 = vmatpush1.msra.mxu0 %v412
        %445 = vmatprep.subr.mxu0 0.0
        %446 = vmatpush1.msra.mxu0 %v413
        %447 = vmatprep.subr.mxu0 0.0
        %448 = vmatpush1.msra.mxu0 %v414
        %449 = vmatprep.subr.mxu0 0.0
        %450 = vmatpush1.msra.mxu0 %v415
        %451 = vmatprep.subr.mxu0 0.0
        %452 = vmatpush1.msra.mxu0 %v416
        %453 = vmatprep.subr.mxu0 0.0
        %454 = vmatpush1.msra.mxu0 %v417
        %455 = vmatprep.subr.mxu0 0.0
        %456 = vmatpush1.msra.mxu0 %v418
        %457 = vmatprep.subr.mxu0 0.0
        %458 = vmatpush1.msra.mxu0 %v419
        %459 = vmatprep.subr.mxu0 0.0
        %460 = vmatpush1.msra.mxu0 %v420
        %461 = vmatprep.subr.mxu0 0.0
        %462 = vmatpush1.msra.mxu0 0.0
        %463 = vmatprep.subr.mxu0 0.0
        %464 = vmatpush1.msra.mxu0 0.0
        %465 = vmatprep.subr.mxu0 0.0
        %466 = vmatpush1.msra.mxu0 0.0
        %467 = vmatprep.subr.mxu0 0.0
        %468 = vmatpush1.msra.mxu0 0.0
        %469 = vmatprep.subr.mxu0 0.0
        %470 = vmatpush1.msra.mxu0 0.0
        %471 = vmatprep.subr.mxu0 0.0
        %472 = vmatpush1.msra.mxu0 0.0
        %473 = vmatprep.subr.mxu0 0.0
        %474 = vmatpush1.msra.mxu0 0.0
        %475 = vmatprep.subr.mxu0 0.0
        %476 = vmatpush1.msra.mxu0 0.0
        %477 = vmatprep.subr.mxu0 0.0
        %478 = vmatpush1.msra.mxu0 0.0
        %479 = vmatprep.subr.mxu0 0.0
        %480 = vmatpush1.msra.mxu0 0.0
        %481 = vmatprep.subr.mxu0 0.0
        %482 = vmatpush1.msra.mxu0 0.0
        %483 = vmatprep.subr.mxu0 0.0
        %484 = vmatpush1.msra.mxu0 0.0
        %485 = vmatprep.subr.mxu0 0.0
        %486 = vmatpush1.msra.mxu0 0.0
        %487 = vmatprep.subr.mxu0 0.0
        %488 = vmatpush1.msra.mxu0 0.0
        %489 = vmatprep.subr.mxu0 0.0
        %490 = vmatpush1.msra.mxu0 0.0
        %491 = vmatprep.subr.mxu0 0.0
        %492 = vmatpush1.msra.mxu0 0.0
        %493 = vmatprep.mubr.f32.mxu0 0.0
        %494 = vmatmul.mubr.f32.gmra.mrb[0].mxu0 %v304
        %v495 = vpop.f32.mrb[0].mxu0
        %v496 = vadd.f32 %v427, %v495
        %v497 = vpop.f32.mrb[0].mxu0
        %498 = vmatprep.mubr.f32.mxu0 0.0
        %499 = vmatmul.mubr.f32.gmra.mrb[0].mxu0 %v305
        %v500 = vpop.f32.mrb[0].mxu0
        %v501 = vadd.f32 %v427, %v500
        %v502 = vpop.f32.mrb[0].mxu0
        %503 = vdwg.mxu0
        %v504 = vxor.u32 %v496, 2147483648
        %v505 = vxor.u32 %v501, 2147483648
        %v506 = vmul.f32 %v504, 1.442695
        %v507 = vpow.pop %v506
        %v508 = vmul.f32 %v505, 1.442695
        %v509 = vpow.pop %v508
        %v510 = vadd.f32 %v507, 1.0
        %v511 = vadd.f32 %v509, 1.0
        %v512 = vrcp.pop %v510
        %v513 = vmul.f32 1.0, %v512
        %v514 = vrcp.pop %v511
        %v515 = vmul.f32 1.0, %v514
        %v516 = vmul.f32 %v496, %v513
        %v517 = vmul.f32 %v501, %v515
        %v518 = vmul.f32 %v396, %v516
        %v519 = vmul.f32 %v401, %v517
        %v520 = vld [vmem:[#allocation2] sm:$0xff]
        %v521 = vld [vmem:[#allocation2 + $0x8] sm:$0xff]
        %v522 = vld [vmem:[%s290] sm:$0xff]
        %v523 = vld [vmem:[%s290 + $0x8] sm:$0xff]
        %v524 = vld [vmem:[%s290 + $0x10] sm:$0xff]
        %v525 = vld [vmem:[%s290 + $0x18] sm:$0xff]
        %v526 = vld [vmem:[%s290 + $0x20] sm:$0xff]
        %v527 = vld [vmem:[%s290 + $0x28] sm:$0xff]
        %v528 = vld [vmem:[%s290 + $0x30] sm:$0xff]
        %v529 = vld [vmem:[%s290 + $0x38] sm:$0xff]
        %v530 = vld [vmem:[%s290 + $0x40] sm:$0xff]
        %v531 = vld [vmem:[%s290 + $0x48] sm:$0xff]
        %v532 = vld [vmem:[%s290 + $0x50] sm:$0xff]
        %v533 = vld [vmem:[%s290 + $0x58] sm:$0xff]
        %v534 = vld [vmem:[%s290 + $0x60] sm:$0xff]
        %v535 = vld [vmem:[%s290 + $0x68] sm:$0xff]
        %v536 = vld [vmem:[%s290 + $0x70] sm:$0xff]
        %v537 = vld [vmem:[%s290 + $0x78] sm:$0xff]
        %538 = vmatprep.subr.mxu0 0.0
        %539 = vmatpush1.msra.mxu0 %v522
        %540 = vmatprep.subr.mxu0 0.0
        %541 = vmatpush1.msra.mxu0 %v523
        %542 = vmatprep.subr.mxu0 0.0
        %543 = vmatpush1.msra.mxu0 %v524
        %544 = vmatprep.subr.mxu0 0.0
        %545 = vmatpush1.msra.mxu0 %v525
        %546 = vmatprep.subr.mxu0 0.0
        %547 = vmatpush1.msra.mxu0 %v526
        %548 = vmatprep.subr.mxu0 0.0
        %549 = vmatpush1.msra.mxu0 %v527
        %550 = vmatprep.subr.mxu0 0.0
        %551 = vmatpush1.msra.mxu0 %v528
        %552 = vmatprep.subr.mxu0 0.0
        %553 = vmatpush1.msra.mxu0 %v529
        %554 = vmatprep.subr.mxu0 0.0
        %555 = vmatpush1.msra.mxu0 %v530
        %556 = vmatprep.subr.mxu0 0.0
        %557 = vmatpush1.msra.mxu0 %v531
        %558 = vmatprep.subr.mxu0 0.0
        %559 = vmatpush1.msra.mxu0 %v532
        %560 = vmatprep.subr.mxu0 0.0
        %561 = vmatpush1.msra.mxu0 %v533
        %562 = vmatprep.subr.mxu0 0.0
        %563 = vmatpush1.msra.mxu0 %v534
        %564 = vmatprep.subr.mxu0 0.0
        %565 = vmatpush1.msra.mxu0 %v535
        %566 = vmatprep.subr.mxu0 0.0
        %567 = vmatpush1.msra.mxu0 %v536
        %568 = vmatprep.subr.mxu0 0.0
        %569 = vmatpush1.msra.mxu0 %v537
        %570 = vmatprep.subr.mxu0 0.0
        %571 = vmatpush1.msra.mxu0 0.0
        %572 = vmatprep.subr.mxu0 0.0
        %573 = vmatpush1.msra.mxu0 0.0
        %574 = vmatprep.subr.mxu0 0.0
        %575 = vmatpush1.msra.mxu0 0.0
        %576 = vmatprep.subr.mxu0 0.0
        %577 = vmatpush1.msra.mxu0 0.0
        %578 = vmatprep.subr.mxu0 0.0
        %579 = vmatpush1.msra.mxu0 0.0
        %580 = vmatprep.subr.mxu0 0.0
        %581 = vmatpush1.msra.mxu0 0.0
        %582 = vmatprep.subr.mxu0 0.0
        %583 = vmatpush1.msra.mxu0 0.0
        %584 = vmatprep.subr.mxu0 0.0
        %585 = vmatpush1.msra.mxu0 0.0
        %586 = vmatprep.subr.mxu0 0.0
        %587 = vmatpush1.msra.mxu0 0.0
        %588 = vmatprep.subr.mxu0 0.0
        %589 = vmatpush1.msra.mxu0 0.0
        %590 = vmatprep.subr.mxu0 0.0
        %591 = vmatpush1.msra.mxu0 0.0
        %592 = vmatprep.subr.mxu0 0.0
        %593 = vmatpush1.msra.mxu0 0.0
        %594 = vmatprep.subr.mxu0 0.0
        %595 = vmatpush1.msra.mxu0 0.0
        %596 = vmatprep.subr.mxu0 0.0
        %597 = vmatpush1.msra.mxu0 0.0
        %598 = vmatprep.subr.mxu0 0.0
        %599 = vmatpush1.msra.mxu0 0.0
        %600 = vmatprep.subr.mxu0 0.0
        %601 = vmatpush1.msra.mxu0 0.0
        %602 = vmatprep.mubr.f32.mxu0 0.0
        %603 = vmatmul.mubr.f32.gmra.mrb[0].mxu0 %v518
        %v604 = vpop.f32.mrb[0].mxu0
        %v605 = vadd.f32 0.0, %v604
        %v606 = vpop.f32.mrb[0].mxu0
        %607 = vmatprep.mubr.f32.mxu0 0.0
        %608 = vmatmul.mubr.f32.gmra.mrb[0].mxu0 %v519
        %v609 = vpop.f32.mrb[0].mxu0
        %v610 = vadd.f32 0.0, %v609
        %v611 = vpop.f32.mrb[0].mxu0
        %612 = vdwg.mxu0
        %v613 = vadd.f32 %v520, %v605
        %v614 = vadd.f32 %v521, %v610
        %615 = vst [vmem:[#allocation2] sm:$0xff] %v613
        %616 = vst [vmem:[#allocation2 + $0x8] sm:$0xff] %v614
        // Predicated region
        $region49: #{mlp_forward.1} parent=39 // pred_check
          %p617 = pneg %p298
        $region50: #{mlp_forward.1} parent=39 // pred_check_branch
          %619 = sbr.rel (%p617) target = $region52
        $region51: #{mlp_forward.1} parent=39 // pred_region
          %v620 = vld [vmem:[#allocation2] sm:$0xff]
          %v621 = vld [vmem:[#allocation2 + $0x8] sm:$0xff]
          %v622 = vld [vmem:[%s4] sm:$0x1]
          %v624 = vlaneseq
          %v625 = vshrl.u32 %v624, 7
          %v626 = vsub.s32 0, %v625
          %v627 = vrot.slane %v622, %v626
          %v629 = vadd.f32 %v620, %v627
          %v630 = vadd.f32 %v621, %v627
          %631 = vst [vmem:[%s296] sm:$0xff] %v629
          %632 = vst [vmem:[%s296 + $0x8] sm:$0xff] %v630
        $region52: #{mlp_forward.1} parent=39 // pred_fallthru
          _
        %s633 = smul.u32 2, %s21
        %p634 = scmp.lt.s32.totalorder %s633, 3
        %s635 = scalar_select %p634, %s633, 3
        %s636 = smul.addr %s635, 8
        %s637 = scalar_lea.vmem %s5, %s636
        // Predicated region
        $region53: #{mlp_forward.1} parent=39 // pred_check
          %p638 = pneg %p172
        $region54: #{mlp_forward.1} parent=39 // pred_check_branch
          %640 = sbr.rel (%p638) target = $region56
        $region55: #{mlp_forward.1} parent=39 // pred_region
          %s641 = smul.u32 2, %s21
        $region56: #{mlp_forward.1} parent=39 // pred_fallthru
          _
      $region40: #{mlp_forward.1} parent=5 // pred_fallthru
        _
      %p642 = scmp.le.s32.totalorder 2, %s12
      // Predicated region
      $region57: #{mlp_forward.1} parent=5 // pred_check
        %p643 = pneg %p642
      $region58: #{mlp_forward.1} parent=5 // pred_check_branch
        %645 = sbr.rel (%p643) target = $region60
      $region59: #{mlp_forward.1} parent=5 // pred_region
        %s646 = ssub.s32 %s12, 2
        // Predicated region
        $region61: #{mlp_forward.1} parent=59 // pred_check
          %p647 = pneg %p178
        $region62: #{mlp_forward.1} parent=59 // pred_check_branch
          %649 = sbr.rel (%p647) target = $region64
        $region63: #{mlp_forward.1} parent=59 // pred_region
          %s650 = smul.u32 2, %s23
          %p651 = scmp.lt.s32.totalorder %s650, 3
          %s652 = scalar_select %p651, %s650, 3
          %s653 = smul.addr %s652, 8
          %s654 = scalar_lea.vmem %s5, %s653
        $region64: #{mlp_forward.1} parent=59 // pred_fallthru
          _
      $region60: #{mlp_forward.1} parent=5 // pred_fallthru
        _
    $region6: #{mlp_forward.1} parent=1 // loop_footer
      %s16 = sadd.s32 1, %s12
    $region7: #{mlp_forward.1} parent=1 // loop_footer_branch
      %11 = sbr.rel target = $region3
    $region8: #{mlp_forward.1} parent=1 // loop_exit
      _
    %655 = vsyncpa [#allocation4], 1
    %s656 = scalar_lea.sflag [#allocation4], 1
    %657 = vsyncpa %s656, 1

</llo_original>
